<compile_context>
chip_gen: v5e
topology: v5e:2x2
jax: 0.10.0
libtpu: 0.0.40
codegen_flags: <defaults>
</compile_context>

<pallas_src>
import functools

import jax
import jax.numpy as jnp
from jax.experimental import pallas as pl
from jax.experimental.pallas import tpu as pltpu


_MIB = 1024 * 1024
# Budget for (double-buffered pipeline blocks + live in-kernel intermediates).
_BLOCK_BUDGET_BYTES = 32 * _MIB
# Scoped-VMEM limit handed to Mosaic: safe on v7x (64 MiB physical per TC),
# well under v5e/v6e's 128 MiB.
_VMEM_LIMIT_BYTES = 48 * _MIB


def _round_up(x, m):
    return ((x + m - 1) // m) * m


def _estimate_vmem_bytes(Bb, Tt, S, Dd, De, in_isz, out_isz):
    """Rough per-step VMEM footprint: x2-buffered blocks + live f32 values."""
    q_blk = Bb * Tt * Dd * in_isz
    k_blk = Bb * S * De * in_isz                       # dominant block
    w_blk = (De * Dd + Dd * Dd) * in_isz + Dd * 4 + Bb * 4
    attn_o = Tt * Bb * Dd * out_isz
    align_o = Tt * Bb * S * out_isz
    pipelined = 2 * (q_blk + k_blk + w_blk + attn_o + align_o)
    # live f32 intermediates (scores/p, c/out) - upper bound, they spill to VMEM
    live = Bb * Tt * S * 4 * 2 + Bb * Tt * max(Dd, De) * 4 * 2
    return pipelined + live


def _tile_candidates(dim, align):
    """(padded_dim, candidate tile sizes): multiples of `align` dividing the
    padded dim, largest first.  Small dims stay un-tiled (a block equal to the
    full array dim is always layout-legal)."""
    if dim <= align:
        return dim, [dim]
    pad = _round_up(dim, align)
    cands = sorted({t for t in range(align, pad + 1, align) if pad % t == 0},
                   reverse=True)
    return pad, cands


def _select_tiles(B, T, S, Dd, De, in_isz, out_isz):
    """Pick (Bb, Tt) under the VMEM budget, preferring >= 2 grid steps.

    Bb is the sublane dim of the f32 output blocks -> align 8.  Tt is the
    sublane dim of the q input block -> align 16 when inputs travel as bf16.
    (Sizing is driven by VMEM/DMA, not "MXU rows": the batched scores/context
    matmuls present M=Tt per batch element regardless of Bb.)
    """
    B_pad, b_cands = _tile_candidates(B, 8)
    T_pad, t_cands = _tile_candidates(T, 16 if in_isz == 2 else 8)

    def est(bb, tt):
        return _estimate_vmem_bytes(bb, tt, S, Dd, De, in_isz, out_isz)

    def steps(bb, tt):
        return (B_pad // bb) * (T_pad // tt)

    pairs = [(bb, tt) for bb in b_cands for tt in t_cands]
    fitting = [p for p in pairs if est(*p) <= _BLOCK_BUDGET_BYTES]
    if fitting:
        # Prefer >= 2 grid steps (v7x second TensorCore + DMA/compute overlap),
        # then the largest block (amortizes ~0.35us per-step overhead).
        multi = [p for p in fitting if steps(*p) >= 2]
        pool = multi if multi else fitting
        Bb, Tt = max(pool, key=lambda p: (p[0] * p[1], p[1]))
    else:
        # Even the smallest block blows the budget (very long S).
        # TODO(synk): add an S-tile grid axis with flash-style online softmax
        # (m/l/acc scratch, S axis "arbitrary") for long source sequences.
        Bb, Tt = min(pairs, key=lambda p: est(*p))
    return Bb, Tt, B_pad, T_pad


def _global_attention_kernel(q_ref,      # (Bb, Tt, Dd)  decoder states h_t
                             k_ref,      # (Bb, S,  De)  encoder states h_s
                             lens_ref,   # (Bb, 1, 1)    int32 context lengths
                             wc_ref,     # (De, Dd)      Wc^T  (c part of linear_out)
                             wh_ref,     # (Dd, Dd)      Wh^T  (h_t part of linear_out)
                             b_ref,      # (1, Dd)       linear_out bias (f32)
                             attn_ref,   # (Tt, Bb, Dd)  out
                             align_ref,  # (Tt, Bb, S)   out
                             *, approx_recip):
    q = q_ref[...]                                    # (Bb, Tt, Dd)
    k = k_ref[...]                                    # (Bb, S, De)
    Bb, Tt, Dd = q.shape
    S, De = k.shape[1], k.shape[2]

    # scores[b,t,s] = q[b,t,:] . k[b,s,:]  (batched, contract last axes; the
    # reference's linear_in output is dead code).  f32 accumulation on MXU.
    # TODO(synk): at tiny Tt/Dd (decode) a VPU/XLU reduction formulation may
    # beat many small per-batch matmuls.
    scores = jax.lax.dot_general(
        q, k, dimension_numbers=(((2,), (2,)), ((0,), (0,))),
        preferred_element_type=jnp.float32)           # (Bb, Tt, S) f32

    # sequence mask: positions >= length get -inf (masked_fill_ semantics; a
    # zero-length row would NaN exactly like the PyTorch reference).
    # Iota is (1,1,S); jnp.where broadcasts -> no (Bb,Tt,S) int32 materialized.
    lens = lens_ref[...]                              # (Bb, 1, 1) int32
    col = jax.lax.broadcasted_iota(jnp.int32, (1, 1, S), 2)
    scores = jnp.where(col < lens, scores, -jnp.inf)

    # softmax over src_len (reciprocal goes to the EUP; approx in fast mode)
    m = jnp.max(scores, axis=-1, keepdims=True)
    e = jnp.exp(scores - m)
    p = e * pl.reciprocal(jnp.sum(e, axis=-1, keepdims=True),
                          approx=approx_recip)        # (Bb, Tt, S) f32

    # context vectors: c[b,t,:] = sum_s p[b,t,s] * k[b,s,:]
    c = jax.lax.dot_general(
        p.astype(k.dtype), k, dimension_numbers=(((2,), (1,)), ((0,), (0,))),
        preferred_element_type=jnp.float32)           # (Bb, Tt, De) f32

    # attn_h = tanh([c ; h_t] @ W^T + b) as two split matmuls with
    # pre-transposed weights; collapse (Bb, Tt) into MXU rows.
    c2 = c.reshape(Bb * Tt, De).astype(wc_ref.dtype)
    q2 = q.reshape(Bb * Tt, Dd).astype(wh_ref.dtype)
    out = jnp.tanh(
        jnp.dot(c2, wc_ref[...], preferred_element_type=jnp.float32)
        + jnp.dot(q2, wh_ref[...], preferred_element_type=jnp.float32)
        + b_ref[...]).reshape(Bb, Tt, Dd)

    # write directly in (T, B, *) layout: small in-VMEM leading-dim transpose
    # (last dim stays in lanes) instead of a post-kernel HBM transpose.
    attn_ref[...] = jnp.transpose(out, (1, 0, 2)).astype(attn_ref.dtype)
    align_ref[...] = jnp.transpose(p, (1, 0, 2)).astype(align_ref.dtype)


@functools.partial(jax.jit, static_argnames=("precision",))
def global_attention(inputs, context, context_lengths, w_out, b_out,
                     *, precision="highest"):
    """inputs [B,T,Dd], context [B,S,De], context_lengths [B] int,
    w_out [Dd, De+Dd] (linear_out weight, column order = [c ; h_t]), b_out [Dd].

    precision: "highest" (f32 MXU operands, exact) or "fast" (bf16 operands
    with f32 accumulation + approx softmax reciprocal).

    Returns (attn_h [T,B,Dd], align_vectors [T,B,S]) like the PyTorch module.
    """
    B, T, Dd = inputs.shape
    Bc, S, De = context.shape
    assert Bc == B, "batch mismatch between inputs and context"
    # the reference bmm / linear_in require enc_hidden == dec_hidden
    assert Dd == De, "GlobalAttention requires enc_hidden == dec_hidden"
    assert w_out.shape == (Dd, De + Dd) and b_out.shape == (Dd,)

    out_dtype = inputs.dtype
    fast = precision == "fast"
    cdtype = jnp.bfloat16 if (fast and inputs.dtype == jnp.float32) else inputs.dtype
    in_isz = jnp.dtype(cdtype).itemsize
    out_isz = jnp.dtype(out_dtype).itemsize

    Bb, Tt, B_pad, T_pad = _select_tiles(B, T, S, Dd, De, in_isz, out_isz)

    # split linear_out and pre-transpose at trace time (free, outside kernel):
    #   linear_out([c ; h_t]) = c @ Wc^T + h_t @ Wh^T + b
    wc_t = jnp.transpose(w_out[:, :De]).astype(cdtype)   # (De, Dd)
    wh_t = jnp.transpose(w_out[:, De:]).astype(cdtype)   # (Dd, Dd)
    bias = b_out.astype(jnp.float32).reshape(1, Dd)

    q = inputs.astype(cdtype)
    k = context.astype(cdtype)
    lens = context_lengths.astype(jnp.int32)
    if B_pad != B or T_pad != T:
        # pad awkward B/T to alignment-friendly multiples; sliced off below.
        q = jnp.pad(q, ((0, B_pad - B), (0, T_pad - T), (0, 0)))
        k = jnp.pad(k, ((0, B_pad - B), (0, 0), (0, 0)))
        lens = jnp.pad(lens, (0, B_pad - B), constant_values=1)  # no all--inf rows
    lens = lens.reshape(B_pad, 1, 1)

    # T innermost: the big (Bb, S, De) context block is reused across Tt steps.
    grid = (B_pad // Bb, T_pad // Tt)

    kernel = functools.partial(_global_attention_kernel, approx_recip=fast)

    attn_h, align = pl.pallas_call(
        kernel,
        out_shape=(
            jax.ShapeDtypeStruct((T_pad, B_pad, Dd), out_dtype),
            jax.ShapeDtypeStruct((T_pad, B_pad, S), out_dtype),
        ),
        grid_spec=pltpu.PrefetchScalarGridSpec(
            num_scalar_prefetch=0,
            grid=grid,
            in_specs=[
                pl.BlockSpec((Bb, Tt, Dd), lambda b, t: (b, t, 0)),   # h_t
                pl.BlockSpec((Bb, S, De), lambda b, t: (b, 0, 0)),    # h_s
                pl.BlockSpec((Bb, 1, 1), lambda b, t: (b, 0, 0)),     # lengths
                pl.BlockSpec((De, Dd), lambda b, t: (0, 0)),          # Wc^T
                pl.BlockSpec((Dd, Dd), lambda b, t: (0, 0)),          # Wh^T
                pl.BlockSpec((1, Dd), lambda b, t: (0, 0)),           # bias
            ],
            out_specs=(
                pl.BlockSpec((Tt, Bb, Dd), lambda b, t: (t, b, 0)),
                pl.BlockSpec((Tt, Bb, S), lambda b, t: (t, b, 0)),
            ),
        ),
        compiler_params=pltpu.CompilerParams(
            dimension_semantics=("parallel", "parallel"),
            vmem_limit_bytes=_VMEM_LIMIT_BYTES),
        # TODO(synk): on v5e (mem-bound, 128 MiB VMEM) pipeline_mode=pl.Buffered(3)
        # on the h_s/h_t specs would hide more DMA; don't copy to v7x (64 MiB).
    )(q, k, lens, wc_t, wh_t, bias)

    if B_pad != B or T_pad != T:
        attn_h = attn_h[:T, :B]
        align = align[:T, :B]
    return attn_h, align


def _reference(inputs, context, context_lengths, w_out, b_out):
    """Pure-JAX reference replicating the PyTorch forward."""
    B, T, Dd = inputs.shape
    _, S, De = context.shape
    align = jnp.einsum('btd,bsd->bts', inputs, context)
    mask = (jnp.arange(S)[None, :] < context_lengths[:, None])[:, None, :]
    align = jnp.where(mask, align, -jnp.inf)
    p = jax.nn.softmax(align, axis=-1)
    c = jnp.einsum('bts,bse->bte', p, context)
    concat = jnp.concatenate([c, inputs], axis=-1)
    attn_h = jnp.tanh(jnp.einsum('btk,dk->btd', concat, w_out) + b_out)
    return jnp.transpose(attn_h, (1, 0, 2)), jnp.transpose(p, (1, 0, 2))


if __name__ == "__main__":
    B, T, S = 2, 8, 8
    enc_hidden = dec_hidden = 32   # reference bmm requires enc_hidden == dec_hidden

    key = jax.random.PRNGKey(0)
    k1, k2, k3, k4 = jax.random.split(key, 4)

    inputs = jax.random.normal(k1, (B, T, dec_hidden), jnp.float32)
    context = jax.random.normal(k2, (B, S, enc_hidden), jnp.float32)
    context_lengths = jnp.array([S, 5], dtype=jnp.int32)  # max == S (masked_fill_ semantics)

    # linear_out: nn.Linear(dec_hidden + enc_hidden, dec_hidden)
    w_out = 0.1 * jax.random.normal(k3, (dec_hidden, enc_hidden + dec_hidden), jnp.float32)
    b_out = 0.1 * jax.random.normal(k4, (dec_hidden,), jnp.float32)
    # linear_in's output is discarded in the reference forward -> not needed here.

    ref_h, ref_a = _reference(inputs, context, context_lengths, w_out, b_out)

    # exact (f32) path: must match the reference tightly
    attn_h, align = global_attention(inputs, context, context_lengths, w_out, b_out)
    jax.block_until_ready((attn_h, align))
    assert attn_h.shape == (T, B, dec_hidden) and align.shape == (T, B, S)
    assert jnp.allclose(attn_h, ref_h, atol=1e-5, rtol=1e-5)
    assert jnp.allclose(align, ref_a, atol=1e-5, rtol=1e-5)

    # fast (bf16 MXU operand) path: looser numerics, sanity-checked
    attn_h_f, align_f = global_attention(inputs, context, context_lengths,
                                         w_out, b_out, precision="fast")
    jax.block_until_ready((attn_h_f, align_f))
    assert jnp.allclose(attn_h_f, ref_h, atol=1e-1, rtol=1e-1)
    assert jnp.allclose(align_f, ref_a, atol=1e-1, rtol=1e-1)

    print("KERNEL_OK")
</pallas_src>

<mosaic_0001>
module attributes {stable_mosaic.version = 11 : i64} {
  func.func @_global_attention_kernel(%arg0: i32, %arg1: i32, %arg2: memref<2x8x32xf32, #tpu.memory_space<vmem>>, %arg3: memref<2x8x32xf32, #tpu.memory_space<vmem>>, %arg4: memref<2x1x1xi32, #tpu.memory_space<vmem>>, %arg5: memref<32x32xf32, #tpu.memory_space<vmem>>, %arg6: memref<32x32xf32, #tpu.memory_space<vmem>>, %arg7: memref<1x32xf32, #tpu.memory_space<vmem>>, %arg8: memref<8x2x32xf32, #tpu.memory_space<vmem>>, %arg9: memref<8x2x8xf32, #tpu.memory_space<vmem>>) attributes {dimension_semantics = [#tpu.dimension_semantics<parallel>, #tpu.dimension_semantics<parallel>], iteration_bounds = array<i64: 1, 1>, scalar_prefetch = 0 : i64, scratch_operands = 0 : i64, tpu.core_type = #tpu.core_type<tc>, window_params = [{transform_indices = @transform_0, window_bounds = array<i64: 2, 8, 32>}, {transform_indices = @transform_1, window_bounds = array<i64: 2, 8, 32>}, {transform_indices = @transform_2, window_bounds = array<i64: 2, 1, 1>}, {pipeline_mode = #tpu.pipeline_mode<synchronous>, transform_indices = @transform_3, window_bounds = array<i64: 32, 32>}, {pipeline_mode = #tpu.pipeline_mode<synchronous>, transform_indices = @transform_4, window_bounds = array<i64: 32, 32>}, {pipeline_mode = #tpu.pipeline_mode<synchronous>, transform_indices = @transform_5, window_bounds = array<i64: 1, 32>}, {transform_indices = @transform_6, window_bounds = array<i64: 8, 2, 32>}, {transform_indices = @transform_7, window_bounds = array<i64: 8, 2, 8>}]} {
    %c0 = arith.constant 0 : index
    %c0_0 = arith.constant 0 : index
    %c0_1 = arith.constant 0 : index
    %0 = vector.load %arg2[%c0, %c0_0, %c0_1] : memref<2x8x32xf32, #tpu.memory_space<vmem>>, vector<2x8x32xf32>
    %c0_2 = arith.constant 0 : index
    %c0_3 = arith.constant 0 : index
    %c0_4 = arith.constant 0 : index
    %1 = vector.load %arg3[%c0_2, %c0_3, %c0_4] : memref<2x8x32xf32, #tpu.memory_space<vmem>>, vector<2x8x32xf32>
    %cst = arith.constant dense<0.000000e+00> : vector<2x8x8xf32>
    %2 = tpu.matmul %0, %1, %cst {dimension_numbers = #tpu.dot_dimension_numbers<[2], [2], [1], [1], [0, 0, 0, 1, 1, 1], [0], [0]>} : vector<2x8x32xf32>, vector<2x8x32xf32>, vector<2x8x8xf32> -> vector<2x8x8xf32>
    %c0_5 = arith.constant 0 : index
    %c0_6 = arith.constant 0 : index
    %c0_7 = arith.constant 0 : index
    %3 = vector.load %arg4[%c0_5, %c0_6, %c0_7] : memref<2x1x1xi32, #tpu.memory_space<vmem>>, vector<2x1x1xi32>
    %4 = tpu.iota {dimensions = array<i32: 2>} : vector<1x1x8xi32>
    %5 = vector.broadcast %4 : vector<1x1x8xi32> to vector<2x1x8xi32>
    %6 = vector.broadcast %3 : vector<2x1x1xi32> to vector<2x1x8xi32>
    %7 = arith.cmpi slt, %5, %6 : vector<2x1x8xi32>
    %cst_8 = arith.constant 0xFF800000 : f32
    %8 = vector.shape_cast %7 : vector<2x1x8xi1> to vector<2x1x8xi1>
    %9 = vector.broadcast %8 : vector<2x1x8xi1> to vector<2x8x8xi1>
    %10 = vector.broadcast %cst_8 : f32 to vector<2x8x8xf32>
    %11 = arith.select %9, %2, %10 : vector<2x8x8xi1>, vector<2x8x8xf32>
    %cst_9 = arith.constant dense<0xFF800000> : vector<2x8xf32>
    %12 = vector.multi_reduction <maximumf>, %11, %cst_9 [2] : vector<2x8x8xf32> to vector<2x8xf32>
    %13 = vector.shape_cast %12 : vector<2x8xf32> to vector<2x8x1xf32>
    %14 = vector.broadcast %13 : vector<2x8x1xf32> to vector<2x8x8xf32>
    %15 = arith.subf %11, %14 : vector<2x8x8xf32>
    %16 = math.exp %15 : vector<2x8x8xf32>
    %cst_10 = arith.constant dense<0.000000e+00> : vector<2x8xf32>
    %17 = vector.multi_reduction <add>, %16, %cst_10 [2] : vector<2x8x8xf32> to vector<2x8xf32>
    %18 = vector.shape_cast %17 : vector<2x8xf32> to vector<2x8x1xf32>
    %19 = tpu.reciprocal %18 : vector<2x8x1xf32> -> vector<2x8x1xf32>
    %20 = vector.broadcast %19 : vector<2x8x1xf32> to vector<2x8x8xf32>
    %21 = arith.mulf %16, %20 : vector<2x8x8xf32>
    %cst_11 = arith.constant dense<0.000000e+00> : vector<2x8x32xf32>
    %22 = tpu.matmul %21, %1, %cst_11 {dimension_numbers = #tpu.dot_dimension_numbers<[2], [1], [1], [2], [0, 0, 0, 1, 1, 2], [0], [0]>} : vector<2x8x8xf32>, vector<2x8x32xf32>, vector<2x8x32xf32> -> vector<2x8x32xf32>
    %23 = vector.shape_cast %22 : vector<2x8x32xf32> to vector<16x32xf32>
    %24 = vector.shape_cast %0 : vector<2x8x32xf32> to vector<16x32xf32>
    %c0_12 = arith.constant 0 : index
    %c0_13 = arith.constant 0 : index
    %25 = vector.load %arg5[%c0_12, %c0_13] : memref<32x32xf32, #tpu.memory_space<vmem>>, vector<32x32xf32>
    %cst_14 = arith.constant dense<0.000000e+00> : vector<16x32xf32>
    %26 = tpu.matmul %23, %25, %cst_14 {dimension_numbers = #tpu.dot_dimension_numbers<[1], [0], [0], [1], [0, 0, 1, 1], [], []>} : vector<16x32xf32>, vector<32x32xf32>, vector<16x32xf32> -> vector<16x32xf32>
    %c0_15 = arith.constant 0 : index
    %c0_16 = arith.constant 0 : index
    %27 = vector.load %arg6[%c0_15, %c0_16] : memref<32x32xf32, #tpu.memory_space<vmem>>, vector<32x32xf32>
    %cst_17 = arith.constant dense<0.000000e+00> : vector<16x32xf32>
    %28 = tpu.matmul %24, %27, %cst_17 {dimension_numbers = #tpu.dot_dimension_numbers<[1], [0], [0], [1], [0, 0, 1, 1], [], []>} : vector<16x32xf32>, vector<32x32xf32>, vector<16x32xf32> -> vector<16x32xf32>
    %29 = arith.addf %26, %28 : vector<16x32xf32>
    %c0_18 = arith.constant 0 : index
    %c0_19 = arith.constant 0 : index
    %30 = vector.load %arg7[%c0_18, %c0_19] : memref<1x32xf32, #tpu.memory_space<vmem>>, vector<1x32xf32>
    %31 = vector.broadcast %30 : vector<1x32xf32> to vector<16x32xf32>
    %32 = arith.addf %29, %31 : vector<16x32xf32>
    %33 = math.tanh %32 : vector<16x32xf32>
    %34 = vector.shape_cast %33 : vector<16x32xf32> to vector<2x8x32xf32>
    %35 = tpu.transpose %34, [1, 0, 2] : vector<2x8x32xf32> -> vector<8x2x32xf32>
    %c0_20 = arith.constant 0 : index
    %c0_21 = arith.constant 0 : index
    %c0_22 = arith.constant 0 : index
    %36 = vector.load %arg8[%c0_20, %c0_21, %c0_22] : memref<8x2x32xf32, #tpu.memory_space<vmem>>, vector<8x2x32xf32>
    tpu.vector_store %arg8[%c0_20, %c0_21, %c0_22], %35 {strides = array<i32>} : memref<8x2x32xf32, #tpu.memory_space<vmem>>, vector<8x2x32xf32>,
    %37 = tpu.transpose %21, [1, 0, 2] : vector<2x8x8xf32> -> vector<8x2x8xf32>
    %c0_23 = arith.constant 0 : index
    %c0_24 = arith.constant 0 : index
    %c0_25 = arith.constant 0 : index
    %38 = vector.load %arg9[%c0_23, %c0_24, %c0_25] : memref<8x2x8xf32, #tpu.memory_space<vmem>>, vector<8x2x8xf32>
    tpu.vector_store %arg9[%c0_23, %c0_24, %c0_25], %37 {strides = array<i32>} : memref<8x2x8xf32, #tpu.memory_space<vmem>>, vector<8x2x8xf32>,
    return
  }
  func.func @transform_0(%arg0: i32, %arg1: i32) -> (i32, i32, i32) {
    %c0_i32 = arith.constant 0 : i32
    %c0_i32_0 = arith.constant 0 : i32
    return %arg0, %arg1, %c0_i32 : i32, i32, i32
  }
  func.func @transform_1(%arg0: i32, %arg1: i32) -> (i32, i32, i32) {
    %c0_i32 = arith.constant 0 : i32
    %c0_i32_0 = arith.constant 0 : i32
    %c0_i32_1 = arith.constant 0 : i32
    return %arg0, %c0_i32, %c0_i32_0 : i32, i32, i32
  }
  func.func @transform_2(%arg0: i32, %arg1: i32) -> (i32, i32, i32) {
    %c0_i32 = arith.constant 0 : i32
    %c0_i32_0 = arith.constant 0 : i32
    %c0_i32_1 = arith.constant 0 : i32
    return %arg0, %c0_i32, %c0_i32_0 : i32, i32, i32
  }
  func.func @transform_3(%arg0: i32, %arg1: i32) -> (i32, i32) {
    %c0_i32 = arith.constant 0 : i32
    %c0_i32_0 = arith.constant 0 : i32
    %c0_i32_1 = arith.constant 0 : i32
    return %c0_i32, %c0_i32_0 : i32, i32
  }
  func.func @transform_4(%arg0: i32, %arg1: i32) -> (i32, i32) {
    %c0_i32 = arith.constant 0 : i32
    %c0_i32_0 = arith.constant 0 : i32
    %c0_i32_1 = arith.constant 0 : i32
    return %c0_i32, %c0_i32_0 : i32, i32
  }
  func.func @transform_5(%arg0: i32, %arg1: i32) -> (i32, i32) {
    %c0_i32 = arith.constant 0 : i32
    %c0_i32_0 = arith.constant 0 : i32
    %c0_i32_1 = arith.constant 0 : i32
    return %c0_i32, %c0_i32_0 : i32, i32
  }
  func.func @transform_6(%arg0: i32, %arg1: i32) -> (i32, i32, i32) {
    %c0_i32 = arith.constant 0 : i32
    %c0_i32_0 = arith.constant 0 : i32
    return %arg1, %arg0, %c0_i32 : i32, i32, i32
  }
  func.func @transform_7(%arg0: i32, %arg1: i32) -> (i32, i32, i32) {
    %c0_i32 = arith.constant 0 : i32
    %c0_i32_0 = arith.constant 0 : i32
    return %arg1, %arg0, %c0_i32 : i32, i32, i32
  }
}

</mosaic_0001>

<llo_original>
// kernel: global_attention.1
$region0: #{global_attention.1}
  #allocation0 [shape = 'u32[]', space=smem, size = 0x4, offset = 0x4, fixed_abs, tag = 'smem constant byte address 0x4 - core index']
  #allocation1 [shape = 'u32[72,128]{1,0:T(1,128)}', space=vmem, size = 0x9000, scoped, tag = 'internal scratch']
  %s0 = inlined_call_operand.vmem [shape: f32[2,8,32], index: 0, kind: input, shape index: {}]
  %s1 = inlined_call_operand.vmem [shape: f32[2,8,32], index: 1, kind: input, shape index: {}]
  %s2 = inlined_call_operand.vmem [shape: s32[2,1,1], index: 2, kind: input, shape index: {}]
  %s3 = inlined_call_operand.vmem [shape: f32[32,32], index: 3, kind: input, shape index: {}]
  %s4 = inlined_call_operand.vmem [shape: f32[32,32], index: 4, kind: input, shape index: {}]
  %s5 = inlined_call_operand.vmem [shape: f32[1,32], index: 5, kind: input, shape index: {}]
  %s6 = inlined_call_operand.hbm [shape: f32[8,2,32], index: 6, kind: output, shape index: {0}]
  %s7 = inlined_call_operand.hbm [shape: f32[8,2,8], index: 7, kind: output, shape index: {1}]
  %8 = xla_tuple %s6, %s7
  %s9 = sld [smem:[#allocation0]]
  $region42: #{global_attention.1} parent=0
    _
  %s11 = ssub.s32 1, %s9
  %s12 = scalar_select 0, %s11, %s9
  $region1: #{global_attention.1} parent=0
    #allocation2 [shape = 'u8[8192]{0}', space=vmem, size = 0x2000, scoped, tag = 'output window, operand 0, single buffered']
    #allocation3 [shape = 's32[1]{0}', space=sflag, size = 0x4, scoped, tag = 'scoped memory for global_attention.1']
    #allocation4 [shape = 'u8[8192]{0}', space=vmem, size = 0x2000, scoped, tag = 'output window, operand 1, single buffered']
    #allocation5 [shape = 's32[1]{0}', space=sflag, size = 0x4, scoped, tag = 'scoped memory for global_attention.1']
    %13 = vsyncpa [#allocation3], 0
    %14 = vsyncpa [#allocation5], 0
    // Predicated region
    $region2: #{global_attention.1} parent=1 // pred_check
      _
    $region3: #{global_attention.1} parent=1 // pred_check_branch
      %16 = sbr.rel (0) target = $region5
    $region4: #{global_attention.1} parent=1 // pred_region
      _
    $region5: #{global_attention.1} parent=1 // pred_fallthru
      _
    // Predicated region
    $region6: #{global_attention.1} parent=1 // pred_check
      _
    $region7: #{global_attention.1} parent=1 // pred_check_branch
      %18 = sbr.rel (0) target = $region9
    $region8: #{global_attention.1} parent=1 // pred_region
      _
    $region9: #{global_attention.1} parent=1 // pred_fallthru
      _
    // Predicated region
    $region10: #{global_attention.1} parent=1 // pred_check
      _
    $region11: #{global_attention.1} parent=1 // pred_check_branch
      %20 = sbr.rel (0) target = $region13
    $region12: #{global_attention.1} parent=1 // pred_region
      _
    $region13: #{global_attention.1} parent=1 // pred_fallthru
      _
    // Predicated region
    $region14: #{global_attention.1} parent=1 // pred_check
      _
    $region15: #{global_attention.1} parent=1 // pred_check_branch
      %22 = sbr.rel (0) target = $region17
    $region16: #{global_attention.1} parent=1 // pred_region
      _
    $region17: #{global_attention.1} parent=1 // pred_fallthru
      _
    // Predicated region
    $region18: #{global_attention.1} parent=1 // pred_check
      _
    $region19: #{global_attention.1} parent=1 // pred_check_branch
      %24 = sbr.rel (0) target = $region21
    $region20: #{global_attention.1} parent=1 // pred_region
      _
    $region21: #{global_attention.1} parent=1 // pred_fallthru
      _
    // Predicated region
    $region22: #{global_attention.1} parent=1 // pred_check
      _
    $region23: #{global_attention.1} parent=1 // pred_check_branch
      %26 = sbr.rel (0) target = $region25
    $region24: #{global_attention.1} parent=1 // pred_region
      _
    $region25: #{global_attention.1} parent=1 // pred_fallthru
      _
    %v27 = vld [vmem:[%s0] sm:$0xff]
    %v28 = vld [vmem:[%s0 + $0x8] sm:$0xff]
    %v29 = vld [vmem:[%s1] sm:$0xff]
    %v30 = vld [vmem:[%s1 + $0x8] sm:$0xff]
    %vm31 = vcmask 261120
    %v33 = vsel %vm31, %v27, 0
    %v36 = vsel %vm31, %v29, 0
    %38 = vmatpush.xpose.msra.mxu0 0.0
    %39 = vmatpush.xpose.msra.mxu0 0.0
    %40 = vmatpush.xpose.msra.mxu0 0.0
    %41 = vmatpush.xpose.msra.mxu0 0.0
    %42 = vmatpush.xpose.msra.mxu0 0.0
    %43 = vmatpush.xpose.msra.mxu0 0.0
    %44 = vmatpush.xpose.msra.mxu0 0.0
    %45 = vmatpush.xpose.msra.mxu0 0.0
    %46 = vmatpush.xpose.msra.mxu0 0.0
    %47 = vmatpush.xpose.msra.mxu0 0.0
    %48 = vmatpush.xpose.msra.mxu0 0.0
    %49 = vmatpush.xpose.msra.mxu0 0.0
    %50 = vmatpush.xpose.msra.mxu0 0.0
    %51 = vmatpush.xpose.msra.mxu0 0.0
    %52 = vmatpush.xpose.msra.mxu0 0.0
    %53 = vmatpush.xpose.msra.mxu0 %v36
    %54 = vmatmul.f32.gmra.mxu0 %v33
    %v55 = vpop.f32.mrf.mxu0
    %v56 = vadd.f32 0.0, %v55
    %57 = vdwg.mxu0
    %v59 = vsel %vm31, %v28, 0
    %v62 = vsel %vm31, %v30, 0
    %64 = vmatpush.xpose.msra.mxu0 0.0
    %65 = vmatpush.xpose.msra.mxu0 0.0
    %66 = vmatpush.xpose.msra.mxu0 0.0
    %67 = vmatpush.xpose.msra.mxu0 0.0
    %68 = vmatpush.xpose.msra.mxu0 0.0
    %69 = vmatpush.xpose.msra.mxu0 0.0
    %70 = vmatpush.xpose.msra.mxu0 0.0
    %71 = vmatpush.xpose.msra.mxu0 0.0
    %72 = vmatpush.xpose.msra.mxu0 0.0
    %73 = vmatpush.xpose.msra.mxu0 0.0
    %74 = vmatpush.xpose.msra.mxu0 0.0
    %75 = vmatpush.xpose.msra.mxu0 0.0
    %76 = vmatpush.xpose.msra.mxu0 0.0
    %77 = vmatpush.xpose.msra.mxu0 0.0
    %78 = vmatpush.xpose.msra.mxu0 0.0
    %79 = vmatpush.xpose.msra.mxu0 %v62
    %80 = vmatmul.f32.gmra.mxu0 %v59
    %v81 = vpop.f32.mrf.mxu0
    %v82 = vadd.f32 0.0, %v81
    %83 = vdwg.mxu0
    %v84 = vld [vmem:[%s2] sm:$0x1]
    %v85 = vld [vmem:[%s2 + $0x1] sm:$0x1]
    %v86 = vlaneseq
    %v87 = vand.u32 %v86, 127
    %88 = vset.pattern.permute.xlu0 0
    %89 = vperm.xlu0 %88, %v84
    %v90 = vpop.permute.xlu0 %89
    %v91 = vperm.slane %v90, 0
    %92 = vset.pattern.permute.xlu0 0
    %93 = vperm.xlu0 %92, %v85
    %v94 = vpop.permute.xlu0 %93
    %v95 = vperm.slane %v94, 0
    %vm96 = vcmp.lt.s32.totalorder %v87, %v91
    %vm97 = vcmp.lt.s32.totalorder %v87, %v95
    %v98 = vsel %vm96, 1, 0
    %v99 = vsel %vm97, 1, 0
    %vm100 = vcmp.eq.s32.totalorder %v98, 1
    %vm101 = vcmp.eq.s32.totalorder %v99, 1
    %v102 = vsel %vm100, %v56, -inf
    %v103 = vsel %vm101, %v82, -inf
    %vm104 = vcmask 64512
    %v105 = vsel %vm104, %v102, -inf
    %106 = vmax.xlane.f32.xlu0 %v105
    %v107 = vpop.xlane.xlu0 %106
    %v108 = vsel %vm104, %v103, -inf
    %109 = vmax.xlane.f32.xlu0 %v108
    %v110 = vpop.xlane.xlu0 %109
    %v111 = vsub.f32 %v102, %v107
    %v112 = vsub.f32 %v103, %v110
    %v113 = vmul.f32 %v111, 1.442695
    %v114 = vpow.pop %v113
    %v115 = vmul.f32 %v112, 1.442695
    %v116 = vpow.pop %v115
    %v117 = vsel %vm104, %v114, 0.0
    %118 = vadd.xlane.f32.xlu0 %v117
    %v119 = vpop.xlane.xlu0 %118
    %v120 = vsel %vm104, %v116, 0.0
    %121 = vadd.xlane.f32.xlu0 %v120
    %v122 = vpop.xlane.xlu0 %121
    %v123 = vrcp.pop %v119
    %v124 = vmul.f32 %v119, %v123
    %v125 = vsub.f32 1.0, %v124
    %v126 = vmul.f32 %v123, %v125
    %v127 = vadd.f32 %v123, %v126
    %vm128 = vweird.f32 %v119
    %vm129 = vweird.f32 %v123
    %vm130 = vmor %vm128, %vm129
    %v131 = vsel %vm130, %v123, %v127
    %v132 = vand.u32 2147483647, %v119
    %vm133 = vcmp.eq.f32.partialorder %v132, 8.507059e+37
    %v134 = vand.u32 %v119, 2147483648
    %v135 = vor.u32 1.1754944e-38, %v134
    %v136 = vsel %vm133, %v135, %v131
    %v137 = vrcp.pop %v122
    %v138 = vmul.f32 %v122, %v137
    %v139 = vsub.f32 1.0, %v138
    %v140 = vmul.f32 %v137, %v139
    %v141 = vadd.f32 %v137, %v140
    %vm142 = vweird.f32 %v122
    %vm143 = vweird.f32 %v137
    %vm144 = vmor %vm142, %vm143
    %v145 = vsel %vm144, %v137, %v141
    %v146 = vand.u32 2147483647, %v122
    %vm147 = vcmp.eq.f32.partialorder %v146, 8.507059e+37
    %v148 = vand.u32 %v122, 2147483648
    %v149 = vor.u32 1.1754944e-38, %v148
    %v150 = vsel %vm147, %v149, %v145
    %v151 = vmul.f32 %v114, %v136
    %v152 = vmul.f32 %v116, %v150
    %v154 = vsel %vm104, %v151, 0
    %156 = vmatpush.msra.mxu0 0.0
    %157 = vmatpush.msra.mxu0 0.0
    %158 = vmatpush.msra.mxu0 0.0
    %159 = vmatpush.msra.mxu0 0.0
    %160 = vmatpush.msra.mxu0 0.0
    %161 = vmatpush.msra.mxu0 0.0
    %162 = vmatpush.msra.mxu0 0.0
    %163 = vmatpush.msra.mxu0 0.0
    %164 = vmatpush.msra.mxu0 0.0
    %165 = vmatpush.msra.mxu0 0.0
    %166 = vmatpush.msra.mxu0 0.0
    %167 = vmatpush.msra.mxu0 0.0
    %168 = vmatpush.msra.mxu0 0.0
    %169 = vmatpush.msra.mxu0 0.0
    %170 = vmatpush.msra.mxu0 0.0
    %171 = vmatpush.msra.mxu0 %v29
    %172 = vmatmul.f32.gmra.mxu0 %v154
    %v173 = vpop.f32.mrf.mxu0
    %v174 = vadd.f32 0.0, %v173
    %175 = vdwg.mxu0
    %v177 = vsel %vm104, %v152, 0
    %179 = vmatpush.msra.mxu0 0.0
    %180 = vmatpush.msra.mxu0 0.0
    %181 = vmatpush.msra.mxu0 0.0
    %182 = vmatpush.msra.mxu0 0.0
    %183 = vmatpush.msra.mxu0 0.0
    %184 = vmatpush.msra.mxu0 0.0
    %185 = vmatpush.msra.mxu0 0.0
    %186 = vmatpush.msra.mxu0 0.0
    %187 = vmatpush.msra.mxu0 0.0
    %188 = vmatpush.msra.mxu0 0.0
    %189 = vmatpush.msra.mxu0 0.0
    %190 = vmatpush.msra.mxu0 0.0
    %191 = vmatpush.msra.mxu0 0.0
    %192 = vmatpush.msra.mxu0 0.0
    %193 = vmatpush.msra.mxu0 0.0
    %194 = vmatpush.msra.mxu0 %v30
    %195 = vmatmul.f32.gmra.mxu0 %v177
    %v196 = vpop.f32.mrf.mxu0
    %v197 = vadd.f32 0.0, %v196
    %198 = vdwg.mxu0
    %v199 = vld [vmem:[%s3] sm:$0xff]
    %v200 = vld [vmem:[%s3 + $0x8] sm:$0xff]
    %v201 = vld [vmem:[%s3 + $0x10] sm:$0xff]
    %v202 = vld [vmem:[%s3 + $0x18] sm:$0xff]
    %v203 = vld [vmem:[%s4] sm:$0xff]
    %v204 = vld [vmem:[%s4 + $0x8] sm:$0xff]
    %v205 = vld [vmem:[%s4 + $0x10] sm:$0xff]
    %v206 = vld [vmem:[%s4 + $0x18] sm:$0xff]
    %207 = vmatpush.msra.mxu0 0.0
    %208 = vmatpush.msra.mxu0 0.0
    %209 = vmatpush.msra.mxu0 0.0
    %210 = vmatpush.msra.mxu0 0.0
    %211 = vmatpush.msra.mxu0 0.0
    %212 = vmatpush.msra.mxu0 0.0
    %213 = vmatpush.msra.mxu0 0.0
    %214 = vmatpush.msra.mxu0 0.0
    %215 = vmatpush.msra.mxu0 0.0
    %216 = vmatpush.msra.mxu0 0.0
    %217 = vmatpush.msra.mxu0 0.0
    %218 = vmatpush.msra.mxu0 0.0
    %219 = vmatpush.msra.mxu0 %v206
    %220 = vmatpush.msra.mxu0 %v205
    %221 = vmatpush.msra.mxu0 %v204
    %222 = vmatpush.msra.mxu0 %v203
    %223 = vmatmul.f32.gmra.mxu0 %v33
    %v224 = vpop.f32.mrf.mxu0
    %v225 = vadd.f32 0.0, %v224
    %226 = vmatmul.f32.gmra.mxu0 %v59
    %v227 = vpop.f32.mrf.mxu0
    %v228 = vadd.f32 0.0, %v227
    %229 = vdwg.mxu0
    %v231 = vsel %vm31, %v174, 0
    %v234 = vsel %vm31, %v197, 0
    %236 = vmatpush.msra.mxu0 0.0
    %237 = vmatpush.msra.mxu0 0.0
    %238 = vmatpush.msra.mxu0 0.0
    %239 = vmatpush.msra.mxu0 0.0
    %240 = vmatpush.msra.mxu0 0.0
    %241 = vmatpush.msra.mxu0 0.0
    %242 = vmatpush.msra.mxu0 0.0
    %243 = vmatpush.msra.mxu0 0.0
    %244 = vmatpush.msra.mxu0 0.0
    %245 = vmatpush.msra.mxu0 0.0
    %246 = vmatpush.msra.mxu0 0.0
    %247 = vmatpush.msra.mxu0 0.0
    %248 = vmatpush.msra.mxu0 %v202
    %249 = vmatpush.msra.mxu0 %v201
    %250 = vmatpush.msra.mxu0 %v200
    %251 = vmatpush.msra.mxu0 %v199
    %252 = vmatmul.f32.gmra.mxu0 %v231
    %v253 = vpop.f32.mrf.mxu0
    %v254 = vadd.f32 %v225, %v253
    %255 = vmatmul.f32.gmra.mxu0 %v234
    %v256 = vpop.f32.mrf.mxu0
    %v257 = vadd.f32 %v228, %v256
    %258 = vdwg.mxu0
    %v259 = vld [vmem:[%s5] sm:$0x1]
    %v261 = vperm.slane %v259, 0
    %v263 = vadd.f32 %v254, %v261
    %v264 = vadd.f32 %v257, %v261
    %v265 = vtanh.pop %v263
    %v266 = vtanh.pop %v264
    %v267 = vrot.slane %v265, 4
    %vm268 = vcmask 1047556
    %v269 = vsel %vm268, 0.0, %v267
    %v271 = vunpack.c.l.s4 1983009808
    %v272 = vunpack.c.0.s8 %v271
    %v273 = vperm.slane %v265, %v272
    %v275 = vunpack.c.l.s4 1983009808
    %v276 = vunpack.c.0.s8 %v275
    %v277 = vperm.slane %v269, %v276
    %v278 = vrot.slane %v266, 4
    %v279 = vsel %vm268, 0.0, %v278
    %v281 = vunpack.c.l.s4 1983009808
    %v282 = vunpack.c.0.s8 %v281
    %v283 = vperm.slane %v266, %v282
    %v285 = vunpack.c.l.s4 1983009808
    %v286 = vunpack.c.0.s8 %v285
    %v287 = vperm.slane %v279, %v286
    %v288 = vrot.slane %v283, 4
    %v289 = vsel %vm268, %v288, %v273
    %v290 = vrot.slane %v273, 4
    %v291 = vsel %vm268, %v283, %v290
    %v293 = vunpack.c.l.s4 1934713408
    %v294 = vunpack.c.0.s8 %v293
    %v295 = vperm.slane %v289, %v294
    %v297 = vunpack.c.l.s4 1934713408
    %v298 = vunpack.c.0.s8 %v297
    %v299 = vperm.slane %v291, %v298
    %v300 = vrot.slane %v287, 4
    %v301 = vsel %vm268, %v300, %v277
    %v302 = vrot.slane %v277, 4
    %v303 = vsel %vm268, %v287, %v302
    %v305 = vunpack.c.l.s4 1934713408
    %v306 = vunpack.c.0.s8 %v305
    %v307 = vperm.slane %v301, %v306
    %v309 = vunpack.c.l.s4 1934713408
    %v310 = vunpack.c.0.s8 %v309
    %v311 = vperm.slane %v303, %v310
    %v312 = vrot.slane %v295, 4
    %v313 = vsel %vm268, 0.0, %v312
    %v314 = vrot.slane %v299, 4
    %v315 = vsel %vm268, 0.0, %v314
    %v316 = vrot.slane %v307, 4
    %v317 = vsel %vm268, 0.0, %v316
    %v318 = vrot.slane %v311, 4
    %v319 = vsel %vm268, 0.0, %v318
    %vm320 = vcmask 254976
    %321 = vst.msk [vmem:[#allocation2] sm:$0x3] %vm320, %v295
    %322 = vst.msk [vmem:[#allocation2 + $0x2] sm:$0x3] %vm320, %v313
    %323 = vst.msk [vmem:[#allocation2 + $0x4] sm:$0x3] %vm320, %v299
    %324 = vst.msk [vmem:[#allocation2 + $0x6] sm:$0x3] %vm320, %v315
    %325 = vst.msk [vmem:[#allocation2 + $0x8] sm:$0x3] %vm320, %v307
    %326 = vst.msk [vmem:[#allocation2 + $0xa] sm:$0x3] %vm320, %v317
    %327 = vst.msk [vmem:[#allocation2 + $0xc] sm:$0x3] %vm320, %v311
    %328 = vst.msk [vmem:[#allocation2 + $0xe] sm:$0x3] %vm320, %v319
    %v329 = vrot.slane %v151, 4
    %v330 = vsel %vm268, 0.0, %v329
    %v332 = vunpack.c.l.s4 1983009808
    %v333 = vunpack.c.0.s8 %v332
    %v334 = vperm.slane %v151, %v333
    %v336 = vunpack.c.l.s4 1983009808
    %v337 = vunpack.c.0.s8 %v336
    %v338 = vperm.slane %v330, %v337
    %v339 = vrot.slane %v152, 4
    %v340 = vsel %vm268, 0.0, %v339
    %v342 = vunpack.c.l.s4 1983009808
    %v343 = vunpack.c.0.s8 %v342
    %v344 = vperm.slane %v152, %v343
    %v346 = vunpack.c.l.s4 1983009808
    %v347 = vunpack.c.0.s8 %v346
    %v348 = vperm.slane %v340, %v347
    %v349 = vrot.slane %v344, 4
    %v350 = vsel %vm268, %v349, %v334
    %v351 = vrot.slane %v334, 4
    %v352 = vsel %vm268, %v344, %v351
    %v354 = vunpack.c.l.s4 1934713408
    %v355 = vunpack.c.0.s8 %v354
    %v356 = vperm.slane %v350, %v355
    %v358 = vunpack.c.l.s4 1934713408
    %v359 = vunpack.c.0.s8 %v358
    %v360 = vperm.slane %v352, %v359
    %v361 = vrot.slane %v348, 4
    %v362 = vsel %vm268, %v361, %v338
    %v363 = vrot.slane %v338, 4
    %v364 = vsel %vm268, %v348, %v363
    %v366 = vunpack.c.l.s4 1934713408
    %v367 = vunpack.c.0.s8 %v366
    %v368 = vperm.slane %v362, %v367
    %v370 = vunpack.c.l.s4 1934713408
    %v371 = vunpack.c.0.s8 %v370
    %v372 = vperm.slane %v364, %v371
    %v373 = vrot.slane %v356, 4
    %v374 = vsel %vm268, 0.0, %v373
    %v375 = vrot.slane %v360, 4
    %v376 = vsel %vm268, 0.0, %v375
    %v377 = vrot.slane %v368, 4
    %v378 = vsel %vm268, 0.0, %v377
    %v379 = vrot.slane %v372, 4
    %v380 = vsel %vm268, 0.0, %v379
    %vm381 = vcmask 58368
    %382 = vst.msk [vmem:[#allocation4] sm:$0x3] %vm381, %v356
    %383 = vst.msk [vmem:[#allocation4 + $0x2] sm:$0x3] %vm381, %v374
    %384 = vst.msk [vmem:[#allocation4 + $0x4] sm:$0x3] %vm381, %v360
    %385 = vst.msk [vmem:[#allocation4 + $0x6] sm:$0x3] %vm381, %v376
    %386 = vst.msk [vmem:[#allocation4 + $0x8] sm:$0x3] %vm381, %v368
    %387 = vst.msk [vmem:[#allocation4 + $0xa] sm:$0x3] %vm381, %v378
    %388 = vst.msk [vmem:[#allocation4 + $0xc] sm:$0x3] %vm381, %v372
    %389 = vst.msk [vmem:[#allocation4 + $0xe] sm:$0x3] %vm381, %v380
    // Predicated region
    $region26: #{global_attention.1} parent=1 // pred_check
      _
    $region27: #{global_attention.1} parent=1 // pred_check_branch
      %391 = sbr.rel (0) target = $region29
    $region28: #{global_attention.1} parent=1 // pred_region
      %393 = vsyncadd [#allocation3], 0
      %s394 = sshll.u32 [#allocation2], 4
      %s395 = int_to_ptr.vmem [resolvable:$true] %s394
      %s396 = sshll.u32 %s6, 4
      %s397 = int_to_ptr.hbm [resolvable:$true] %s396
      %402 = dma.vmem_to_hbm [thread:$0]  %s395, 256, %s397, [#allocation3], 32, 32, 2
    $region29: #{global_attention.1} parent=1 // pred_fallthru
      _
    // Predicated region
    $region30: #{global_attention.1} parent=1 // pred_check
      _
    $region31: #{global_attention.1} parent=1 // pred_check_branch
      %404 = sbr.rel (0) target = $region33
    $region32: #{global_attention.1} parent=1 // pred_region
      %406 = vsyncadd [#allocation5], 0
      %s407 = sshll.u32 [#allocation4], 4
      %s408 = int_to_ptr.vmem [resolvable:$true] %s407
      %s409 = sshll.u32 %s7, 4
      %s410 = int_to_ptr.hbm [resolvable:$true] %s409
      %415 = dma.vmem_to_hbm [thread:$0]  %s408, 256, %s410, [#allocation5], 32, 32, 2
    $region33: #{global_attention.1} parent=1 // pred_fallthru
      _
    // Predicated region
    $region34: #{global_attention.1} parent=1 // pred_check
      _
    $region35: #{global_attention.1} parent=1 // pred_check_branch
      %417 = sbr.rel (0) target = $region37
    $region36: #{global_attention.1} parent=1 // pred_region
      %419 = dma.done [#allocation3], 256
    $region37: #{global_attention.1} parent=1 // pred_fallthru
      _
    // Predicated region
    $region38: #{global_attention.1} parent=1 // pred_check
      _
    $region39: #{global_attention.1} parent=1 // pred_check_branch
      %421 = sbr.rel (0) target = $region41
    $region40: #{global_attention.1} parent=1 // pred_region
      %423 = dma.done [#allocation5], 256
    $region41: #{global_attention.1} parent=1 // pred_fallthru
      _
    %424 = vsyncpa [#allocation3], 1
    %425 = vsyncpa [#allocation5], 1

</llo_original>
